<compile_context>
chip_gen: v5e
topology: v5e:2x2
jax: 0.10.0
libtpu: 0.0.40
codegen_flags: <defaults>
</compile_context>

<pallas_src>
import functools
import math

import jax
import jax.numpy as jnp
from jax.experimental import pallas as pl
from jax.experimental.pallas import tpu as pltpu


def _conv2d_fused_kernel(x_ref, w_ref, o_ref, stack_ref, *, shifts):
    """Fused VALID conv; everything is VMEM-resident, one MXU dot total.

    x_ref     : (N, C, L)      input, spatial flattened to L = H*W (lane axis)
    w_ref     : (O, K_pad)     packed weights; col t*C+c = weight[:,c,kh,kw],
                               col T*C = bias (multiplies a ones row), rest zero
    o_ref     : (N, O, L)      full-width result; wrapper slices the valid region
    stack_ref : (K_pad, N*L)   VMEM scratch holding the stacked/rolled operand
    shifts    : static tuple, shifts[t] = kh*W + kw (flat lane shift of tap t)
    """
    N, C, L = x_ref.shape
    K_pad, NL = stack_ref.shape
    TC = len(shifts) * C
    assert NL == N * L

    # Fold the batch onto the lane axis: (C, N*L).  Each x_ref[n] block is
    # tile-aligned and the lane offsets are multiples of 128, so this concat is
    # essentially vreg placement (no lane rotation).
    if N == 1:
        x_all = x_ref[0]
    else:
        x_all = jnp.concatenate([x_ref[n] for n in range(N)], axis=1)

    # Bias row (ones) and zero padding rows of the stacked operand, written once.
    # Padding rows MUST be zeroed: uninitialized VMEM could contain NaNs and the
    # matching weight columns being zero would not save us (0 * NaN = NaN).
    stack_ref[TC:TC + 1, :] = jnp.ones((1, NL), jnp.float32)
    if K_pad > TC + 1:
        stack_ref[TC + 1:, :] = jnp.zeros((K_pad - TC - 1, NL), jnp.float32)

    # im2col fused in-kernel via XLU lane rotations: tap t fills rows [t*C, (t+1)*C).
    # xs[:, q] == x_all[:, q + s] for every *valid* output position q; wrapped lanes
    # (end-of-array or batch-boundary crossings) only land in the discarded border.
    for t, s in enumerate(shifts):
        xs = x_all if s == 0 else pltpu.roll(x_all, shift=NL - s, axis=1)
        stack_ref[t * C:(t + 1) * C, :] = xs

    # Single fused MXU dot: (O, K_pad) @ (K_pad, N*L) -> (O, N*L), bias folded in.
    acc = jnp.dot(w_ref[...], stack_ref[...], preferred_element_type=jnp.float32)

    # Lane-dense stores: one unmasked full-width (O, L) block per image, channel-major
    # so the wrapper's NCHW reshape stays free.  Slices are 128-lane aligned.
    for n in range(N):
        o_ref[n] = acc[:, n * L:(n + 1) * L].astype(o_ref.dtype)


def pack_conv_params(weight, bias, k_pad):
    """Init-time packing: (O, C, KH, KW) + (O,) -> (O, k_pad) fused weight matrix.

    Column t*C + c (t = kh*KW + kw) holds weight[:, c, kh, kw]; column T*C holds the
    bias (it multiplies a constant-ones row of the stacked operand); remaining columns
    are zero padding up to k_pad.  Done ONCE, not per forward call.
    """
    O, C, KH, KW = weight.shape
    tc = KH * KW * C
    assert k_pad >= tc + 1
    w_flat = jnp.transpose(weight, (0, 2, 3, 1)).reshape(O, tc)  # tap-major, channel-minor
    cols = [w_flat, bias[:, None]]
    if k_pad > tc + 1:
        cols.append(jnp.zeros((O, k_pad - tc - 1), weight.dtype))
    return jnp.concatenate(cols, axis=1)  # (O, k_pad)


def conv2d_pallas(x_nchw, w_mat, *, kh, kw):
    """Conv2d with stride=1, padding=0 (VALID), matching torch.nn.Conv2d(3, 6, 3, 1, 0)."""
    N, C, H, W = x_nchw.shape
    O, K_pad = w_mat.shape
    Ho, Wo = H - kh + 1, W - kw + 1
    L = H * W
    NL = N * L

    assert L % 128 == 0, "flattened spatial axis must be lane-aligned (multiple of 128)"
    shifts = tuple(r * W + c for r in range(kh) for c in range(kw))
    # Wrap-around / batch-folding safety: the largest shift applied to the largest
    # *valid* output position must stay inside the same image's lane block, so wrapped
    # (or batch-crossing) lanes only ever land in the discarded >=Ho / >=Wo border.
    assert (Ho - 1) * W + (Wo - 1) + max(shifts) < L

    x_flat = x_nchw.reshape(N, C, L)  # free reshape (trailing contiguous dims)

    out_full = pl.pallas_call(
        functools.partial(_conv2d_fused_kernel, shifts=shifts),
        out_shape=jax.ShapeDtypeStruct((N, O, L), x_nchw.dtype),
        in_specs=[
            pl.BlockSpec(memory_space=pltpu.MemorySpace.VMEM),  # whole input in VMEM
            pl.BlockSpec(memory_space=pltpu.MemorySpace.VMEM),  # packed weights
        ],
        out_specs=pl.BlockSpec(memory_space=pltpu.MemorySpace.VMEM),
        scratch_shapes=[pltpu.VMEM((K_pad, NL), jnp.float32)],
        cost_estimate=pl.CostEstimate(
            flops=2 * O * K_pad * NL,
            transcendentals=0,
            bytes_accessed=(x_flat.size + w_mat.size + N * O * L) * 4,
        ),
    )(x_flat, w_mat)

    # Free reshape back to channel-major NCHW; the valid-region slice is the only
    # remaining XLA glue (required to return Conv2d's (N, O, Ho, Wo) output).
    return out_full.reshape(N, O, H, W)[:, :, :Ho, :Wo]


if __name__ == "__main__":
    key = jax.random.PRNGKey(0)
    k_x, k_w, k_b = jax.random.split(key, 3)

    # Shapes consistent with Conv2d(3, 6, 3, 1, 0): NCHW input with C=3.
    N, C, H, W = 2, 3, 16, 16
    O, KH, KW = 6, 3, 3

    x = jax.random.normal(k_x, (N, C, H, W), dtype=jnp.float32)

    # Deterministic parameter init (mirrors PyTorch's default uniform(-1/sqrt(fan_in), .)).
    fan_in = C * KH * KW
    bound = 1.0 / math.sqrt(fan_in)
    weight = jax.random.uniform(k_w, (O, C, KH, KW), minval=-bound, maxval=bound,
                                dtype=jnp.float32)
    bias = jax.random.uniform(k_b, (O,), minval=-bound, maxval=bound, dtype=jnp.float32)

    # "Init-time" packing (once) + jitted forward (one launch for reshape+kernel+slice).
    K_PAD = 32  # 27 tap rows + 1 bias row + 4 zero rows -> 8-sublane-aligned K
    w_mat = pack_conv_params(weight, bias, K_PAD)
    fwd = jax.jit(functools.partial(conv2d_pallas, kh=KH, kw=KW))

    out = jax.block_until_ready(fwd(x, w_mat))

    # Reference check against XLA's conv.
    ref = jax.lax.conv_general_dilated(
        x, weight, window_strides=(1, 1), padding="VALID",
        dimension_numbers=("NCHW", "OIHW", "NCHW"),
    ) + bias[None, :, None, None]

    assert out.shape == (N, O, H - KH + 1, W - KW + 1), out.shape
    assert jnp.allclose(out, ref, atol=1e-5, rtol=1e-5), "mismatch vs reference conv"

    print("KERNEL_OK")
</pallas_src>

<mosaic_0001>
module attributes {stable_mosaic.version = 11 : i64} {
  func.func @_conv2d_fused_kernel(%arg0: memref<2x3x256xf32, #tpu.memory_space<vmem>>, %arg1: memref<6x32xf32, #tpu.memory_space<vmem>>, %arg2: memref<2x6x256xf32, #tpu.memory_space<vmem>>, %arg3: memref<32x512xf32, #tpu.memory_space<vmem>>) attributes {dimension_semantics = [], scalar_prefetch = 0 : i64, scratch_operands = 1 : i64, tpu.core_type = #tpu.core_type<tc>} {
    %c0 = arith.constant 0 : index
    %c0_0 = arith.constant 0 : index
    %c0_1 = arith.constant 0 : index
    %0 = vector.load %arg0[%c0, %c0_0, %c0_1] : memref<2x3x256xf32, #tpu.memory_space<vmem>>, vector<1x3x256xf32>
    %1 = vector.shape_cast %0 : vector<1x3x256xf32> to vector<3x256xf32>
    %c1 = arith.constant 1 : index
    %c0_2 = arith.constant 0 : index
    %c0_3 = arith.constant 0 : index
    %2 = vector.load %arg0[%c1, %c0_2, %c0_3] : memref<2x3x256xf32, #tpu.memory_space<vmem>>, vector<1x3x256xf32>
    %3 = vector.shape_cast %2 : vector<1x3x256xf32> to vector<3x256xf32>
    %4 = tpu.concatenate %1, %3 in 1 : vector<3x256xf32>, vector<3x256xf32> -> vector<3x512xf32>
    %cst = arith.constant 1.000000e+00 : f32
    %5 = vector.broadcast %cst : f32 to vector<1x512xf32>
    %c27 = arith.constant 27 : index
    %c0_4 = arith.constant 0 : index
    %6 = vector.load %arg3[%c27, %c0_4] : memref<32x512xf32, #tpu.memory_space<vmem>>, vector<1x512xf32>
    tpu.vector_store %arg3[%c27, %c0_4], %5 {strides = array<i32>} : memref<32x512xf32, #tpu.memory_space<vmem>>, vector<1x512xf32>,
    %cst_5 = arith.constant 0.000000e+00 : f32
    %7 = vector.broadcast %cst_5 : f32 to vector<4x512xf32>
    %c28 = arith.constant 28 : index
    %c0_6 = arith.constant 0 : index
    %8 = vector.load %arg3[%c28, %c0_6] : memref<32x512xf32, #tpu.memory_space<vmem>>, vector<4x512xf32>
    tpu.vector_store %arg3[%c28, %c0_6], %7 {strides = array<i32>} : memref<32x512xf32, #tpu.memory_space<vmem>>, vector<4x512xf32>,
    %c0_7 = arith.constant 0 : index
    %c0_8 = arith.constant 0 : index
    %9 = vector.load %arg3[%c0_7, %c0_8] : memref<32x512xf32, #tpu.memory_space<vmem>>, vector<3x512xf32>
    tpu.vector_store %arg3[%c0_7, %c0_8], %4 {strides = array<i32>} : memref<32x512xf32, #tpu.memory_space<vmem>>, vector<3x512xf32>,
    %c511_i32 = arith.constant 511 : i32
    %10 = tpu.dynamic_rotate %4 by %c511_i32 dim 1 : vector<3x512xf32>, i32 -> vector<3x512xf32>
    %c3 = arith.constant 3 : index
    %c0_9 = arith.constant 0 : index
    %11 = vector.load %arg3[%c3, %c0_9] : memref<32x512xf32, #tpu.memory_space<vmem>>, vector<3x512xf32>
    tpu.vector_store %arg3[%c3, %c0_9], %10 {strides = array<i32>} : memref<32x512xf32, #tpu.memory_space<vmem>>, vector<3x512xf32>,
    %c510_i32 = arith.constant 510 : i32
    %12 = tpu.dynamic_rotate %4 by %c510_i32 dim 1 : vector<3x512xf32>, i32 -> vector<3x512xf32>
    %c6 = arith.constant 6 : index
    %c0_10 = arith.constant 0 : index
    %13 = vector.load %arg3[%c6, %c0_10] : memref<32x512xf32, #tpu.memory_space<vmem>>, vector<3x512xf32>
    tpu.vector_store %arg3[%c6, %c0_10], %12 {strides = array<i32>} : memref<32x512xf32, #tpu.memory_space<vmem>>, vector<3x512xf32>,
    %c496_i32 = arith.constant 496 : i32
    %14 = tpu.dynamic_rotate %4 by %c496_i32 dim 1 : vector<3x512xf32>, i32 -> vector<3x512xf32>
    %c9 = arith.constant 9 : index
    %c0_11 = arith.constant 0 : index
    %15 = vector.load %arg3[%c9, %c0_11] : memref<32x512xf32, #tpu.memory_space<vmem>>, vector<3x512xf32>
    tpu.vector_store %arg3[%c9, %c0_11], %14 {strides = array<i32>} : memref<32x512xf32, #tpu.memory_space<vmem>>, vector<3x512xf32>,
    %c495_i32 = arith.constant 495 : i32
    %16 = tpu.dynamic_rotate %4 by %c495_i32 dim 1 : vector<3x512xf32>, i32 -> vector<3x512xf32>
    %c12 = arith.constant 12 : index
    %c0_12 = arith.constant 0 : index
    %17 = vector.load %arg3[%c12, %c0_12] : memref<32x512xf32, #tpu.memory_space<vmem>>, vector<3x512xf32>
    tpu.vector_store %arg3[%c12, %c0_12], %16 {strides = array<i32>} : memref<32x512xf32, #tpu.memory_space<vmem>>, vector<3x512xf32>,
    %c494_i32 = arith.constant 494 : i32
    %18 = tpu.dynamic_rotate %4 by %c494_i32 dim 1 : vector<3x512xf32>, i32 -> vector<3x512xf32>
    %c15 = arith.constant 15 : index
    %c0_13 = arith.constant 0 : index
    %19 = vector.load %arg3[%c15, %c0_13] : memref<32x512xf32, #tpu.memory_space<vmem>>, vector<3x512xf32>
    tpu.vector_store %arg3[%c15, %c0_13], %18 {strides = array<i32>} : memref<32x512xf32, #tpu.memory_space<vmem>>, vector<3x512xf32>,
    %c480_i32 = arith.constant 480 : i32
    %20 = tpu.dynamic_rotate %4 by %c480_i32 dim 1 : vector<3x512xf32>, i32 -> vector<3x512xf32>
    %c18 = arith.constant 18 : index
    %c0_14 = arith.constant 0 : index
    %21 = vector.load %arg3[%c18, %c0_14] : memref<32x512xf32, #tpu.memory_space<vmem>>, vector<3x512xf32>
    tpu.vector_store %arg3[%c18, %c0_14], %20 {strides = array<i32>} : memref<32x512xf32, #tpu.memory_space<vmem>>, vector<3x512xf32>,
    %c479_i32 = arith.constant 479 : i32
    %22 = tpu.dynamic_rotate %4 by %c479_i32 dim 1 : vector<3x512xf32>, i32 -> vector<3x512xf32>
    %c21 = arith.constant 21 : index
    %c0_15 = arith.constant 0 : index
    %23 = vector.load %arg3[%c21, %c0_15] : memref<32x512xf32, #tpu.memory_space<vmem>>, vector<3x512xf32>
    tpu.vector_store %arg3[%c21, %c0_15], %22 {strides = array<i32>} : memref<32x512xf32, #tpu.memory_space<vmem>>, vector<3x512xf32>,
    %c478_i32 = arith.constant 478 : i32
    %24 = tpu.dynamic_rotate %4 by %c478_i32 dim 1 : vector<3x512xf32>, i32 -> vector<3x512xf32>
    %c24 = arith.constant 24 : index
    %c0_16 = arith.constant 0 : index
    %25 = vector.load %arg3[%c24, %c0_16] : memref<32x512xf32, #tpu.memory_space<vmem>>, vector<3x512xf32>
    tpu.vector_store %arg3[%c24, %c0_16], %24 {strides = array<i32>} : memref<32x512xf32, #tpu.memory_space<vmem>>, vector<3x512xf32>,
    %c0_17 = arith.constant 0 : index
    %c0_18 = arith.constant 0 : index
    %26 = vector.load %arg1[%c0_17, %c0_18] : memref<6x32xf32, #tpu.memory_space<vmem>>, vector<6x32xf32>
    %c0_19 = arith.constant 0 : index
    %c0_20 = arith.constant 0 : index
    %27 = vector.load %arg3[%c0_19, %c0_20] : memref<32x512xf32, #tpu.memory_space<vmem>>, vector<32x512xf32>
    %cst_21 = arith.constant dense<0.000000e+00> : vector<6x512xf32>
    %28 = tpu.matmul %26, %27, %cst_21 {dimension_numbers = #tpu.dot_dimension_numbers<[1], [0], [0], [1], [0, 0, 1, 1], [], []>} : vector<6x32xf32>, vector<32x512xf32>, vector<6x512xf32> -> vector<6x512xf32>
    %29 = vector.extract_strided_slice %28 {offsets = [0, 0], sizes = [6, 256], strides = [1, 1]} : vector<6x512xf32> to vector<6x256xf32>
    %c0_22 = arith.constant 0 : index
    %c0_23 = arith.constant 0 : index
    %c0_24 = arith.constant 0 : index
    %30 = vector.load %arg2[%c0_22, %c0_23, %c0_24] : memref<2x6x256xf32, #tpu.memory_space<vmem>>, vector<1x6x256xf32>
    %31 = vector.shape_cast %30 : vector<1x6x256xf32> to vector<6x256xf32>
    %32 = vector.shape_cast %29 : vector<6x256xf32> to vector<1x6x256xf32>
    tpu.vector_store %arg2[%c0_22, %c0_23, %c0_24], %32 {strides = array<i32>} : memref<2x6x256xf32, #tpu.memory_space<vmem>>, vector<1x6x256xf32>,
    %33 = vector.extract_strided_slice %28 {offsets = [0, 256], sizes = [6, 256], strides = [1, 1]} : vector<6x512xf32> to vector<6x256xf32>
    %c1_25 = arith.constant 1 : index
    %c0_26 = arith.constant 0 : index
    %c0_27 = arith.constant 0 : index
    %34 = vector.load %arg2[%c1_25, %c0_26, %c0_27] : memref<2x6x256xf32, #tpu.memory_space<vmem>>, vector<1x6x256xf32>
    %35 = vector.shape_cast %34 : vector<1x6x256xf32> to vector<6x256xf32>
    %36 = vector.shape_cast %33 : vector<6x256xf32> to vector<1x6x256xf32>
    tpu.vector_store %arg2[%c1_25, %c0_26, %c0_27], %36 {strides = array<i32>} : memref<2x6x256xf32, #tpu.memory_space<vmem>>, vector<1x6x256xf32>,
    return
  }
}

</mosaic_0001>

<llo_original>
// kernel: conv2d_pallas.1
$region0: #{conv2d_pallas.1}
  #allocation0 [shape = 'u32[]', space=smem, size = 0x4, offset = 0x4, fixed_abs, tag = 'smem constant byte address 0x4 - core index']
  #allocation1 [shape = 'u32[72,128]{1,0:T(1,128)}', space=vmem, size = 0x9000, scoped, tag = 'internal scratch']
  #allocation2 [shape = 'f32[32,512]{1,0:T(8,128)}', space=vmem, size = 0x10000, scoped, tag = 'scratch operand']
  %s0 = inlined_call_operand.vmem [shape: f32[2,3,256], index: 0, kind: input, shape index: {}]
  %s1 = inlined_call_operand.vmem [shape: f32[6,32], index: 1, kind: input, shape index: {}]
  %s2 = inlined_call_operand.vmem [shape: f32[2,6,256], index: 2, kind: output, shape index: {}]
  %s3 = sld [smem:[#allocation0]]
  $region18: #{conv2d_pallas.1} parent=0
    _
  %s5 = ssub.s32 1, %s3
  %s6 = scalar_select 0, %s5, %s3
  // Predicated region
  $region2: #{conv2d_pallas.1} parent=0 // pred_check
    _
  $region3: #{conv2d_pallas.1} parent=0 // pred_check_branch
    %8 = sbr.rel (0) target = $region5
  $region4: #{conv2d_pallas.1} parent=0 // pred_region
    _
  $region5: #{conv2d_pallas.1} parent=0 // pred_fallthru
    _
  // Predicated region
  $region6: #{conv2d_pallas.1} parent=0 // pred_check
    _
  $region7: #{conv2d_pallas.1} parent=0 // pred_check_branch
    %10 = sbr.rel (0) target = $region9
  $region8: #{conv2d_pallas.1} parent=0 // pred_region
    _
  $region9: #{conv2d_pallas.1} parent=0 // pred_fallthru
    _
  %v11 = vld [vmem:[%s0] sm:$0x77]
  %s12 = scalar_lea.vmem %s0, 8
  %v13 = vld [vmem:[%s12] sm:$0x77]
  %15 = vst [vmem:[#allocation1] ss:$2 sm:$0xff] %v11
  %v16 = vld.sshfl [vmem:[#allocation1] sm:$0xff pattern:$0x75316420]
  %v17 = vld.sshfl [vmem:[#allocation1 + $0x8] sm:$0xff pattern:$0x75316420]
  %21 = vst [vmem:[#allocation1] ss:$2 sm:$0xff] %v13
  %v22 = vld.sshfl [vmem:[#allocation1] sm:$0xff pattern:$0x75316420]
  %v23 = vld.sshfl [vmem:[#allocation1 + $0x8] sm:$0xff pattern:$0x75316420]
  %v26 = vlaneseq
  %vm27 = vcmp.ge.s32.totalorder %v26, 0
  %vm28 = vcmp.lt.s32.totalorder %v26, 512
  %vm29 = vmand %vm27, %vm28
  %s30 = scalar_lea.vmem [#allocation2], 99
  %31 = vst.msk [vmem:[%s30] ss:$8 sm:$0xf] %vm29, 1.0
  %32 = vst.msk [vmem:[%s30] ss:$8 sm:$0x0] %vm29, 1.0
  %33 = vst [vmem:[#allocation2 + $0x60] sm:$0xf0] 0.0
  %34 = vst [vmem:[#allocation2 + $0x68] sm:$0xf0] 0.0
  %35 = vst [vmem:[#allocation2 + $0x70] sm:$0xf0] 0.0
  %36 = vst [vmem:[#allocation2 + $0x78] sm:$0xf0] 0.0
  %37 = vst [vmem:[#allocation2] sm:$0x7] %v16
  %38 = vst [vmem:[#allocation2 + $0x8] sm:$0x7] %v17
  %39 = vst [vmem:[#allocation2 + $0x10] sm:$0x7] %v22
  %40 = vst [vmem:[#allocation2 + $0x18] sm:$0x7] %v23
  %41 = vrot.lane.b32.xlu0 %v16, 127
  %v42 = vpop.permute.xlu0 %41
  %43 = vrot.lane.b32.xlu0 %v17, 127
  %v44 = vpop.permute.xlu0 %43
  %45 = vrot.lane.b32.xlu0 %v22, 127
  %v46 = vpop.permute.xlu0 %45
  %47 = vrot.lane.b32.xlu0 %v23, 127
  %v48 = vpop.permute.xlu0 %47
  %v49 = vlaneseq
  %v50 = vand.u32 %v49, 127
  %vm51 = vcmp.lt.s32.totalorder %v50, 127
  %v52 = vsel %vm51, %v46, %v48
  %v53 = vsel %vm51, %v44, %v46
  %v54 = vsel %vm51, %v42, %v44
  %v55 = vsel %vm51, %v48, %v42
  %v60 = vrot.slane %v54, 5
  %v61 = vrot.slane %v53, 5
  %v62 = vrot.slane %v52, 5
  %v63 = vrot.slane %v55, 5
  %68 = vst [vmem:[#allocation2] sm:$0x38] %v60
  %69 = vst [vmem:[#allocation2 + $0x8] sm:$0x38] %v61
  %70 = vst [vmem:[#allocation2 + $0x10] sm:$0x38] %v62
  %71 = vst [vmem:[#allocation2 + $0x18] sm:$0x38] %v63
  %72 = vrot.lane.b32.xlu0 %v16, 126
  %v73 = vpop.permute.xlu0 %72
  %74 = vrot.lane.b32.xlu0 %v17, 126
  %v75 = vpop.permute.xlu0 %74
  %76 = vrot.lane.b32.xlu0 %v22, 126
  %v77 = vpop.permute.xlu0 %76
  %78 = vrot.lane.b32.xlu0 %v23, 126
  %v79 = vpop.permute.xlu0 %78
  %vm80 = vcmp.lt.s32.totalorder %v50, 126
  %v81 = vsel %vm80, %v77, %v79
  %v82 = vsel %vm80, %v75, %v77
  %v83 = vsel %vm80, %v73, %v75
  %v84 = vsel %vm80, %v79, %v73
  %v89 = vrot.slane %v83, 2
  %v90 = vrot.slane %v82, 2
  %v91 = vrot.slane %v81, 2
  %v92 = vrot.slane %v84, 2
  %97 = vst [vmem:[#allocation2] sm:$0xc0] %v89
  %98 = vst [vmem:[#allocation2 + $0x8] sm:$0xc0] %v90
  %99 = vst [vmem:[#allocation2 + $0x10] sm:$0xc0] %v91
  %100 = vst [vmem:[#allocation2 + $0x18] sm:$0xc0] %v92
  %101 = vst [vmem:[#allocation2 + $0x20] sm:$0x1] %v89
  %102 = vst [vmem:[#allocation2 + $0x28] sm:$0x1] %v90
  %103 = vst [vmem:[#allocation2 + $0x30] sm:$0x1] %v91
  %104 = vst [vmem:[#allocation2 + $0x38] sm:$0x1] %v92
  %105 = vrot.lane.b32.xlu0 %v16, 112
  %v106 = vpop.permute.xlu0 %105
  %107 = vrot.lane.b32.xlu0 %v17, 112
  %v108 = vpop.permute.xlu0 %107
  %109 = vrot.lane.b32.xlu0 %v22, 112
  %v110 = vpop.permute.xlu0 %109
  %111 = vrot.lane.b32.xlu0 %v23, 112
  %v112 = vpop.permute.xlu0 %111
  %vm113 = vcmp.lt.s32.totalorder %v50, 112
  %v114 = vsel %vm113, %v110, %v112
  %v115 = vsel %vm113, %v108, %v110
  %v116 = vsel %vm113, %v106, %v108
  %v117 = vsel %vm113, %v112, %v106
  %v122 = vrot.slane %v116, 7
  %v123 = vrot.slane %v115, 7
  %v124 = vrot.slane %v114, 7
  %v125 = vrot.slane %v117, 7
  %130 = vst [vmem:[#allocation2 + $0x20] sm:$0xe] %v122
  %131 = vst [vmem:[#allocation2 + $0x28] sm:$0xe] %v123
  %132 = vst [vmem:[#allocation2 + $0x30] sm:$0xe] %v124
  %133 = vst [vmem:[#allocation2 + $0x38] sm:$0xe] %v125
  %134 = vrot.lane.b32.xlu0 %v16, 111
  %v135 = vpop.permute.xlu0 %134
  %136 = vrot.lane.b32.xlu0 %v17, 111
  %v137 = vpop.permute.xlu0 %136
  %138 = vrot.lane.b32.xlu0 %v22, 111
  %v139 = vpop.permute.xlu0 %138
  %140 = vrot.lane.b32.xlu0 %v23, 111
  %v141 = vpop.permute.xlu0 %140
  %vm142 = vcmp.lt.s32.totalorder %v50, 111
  %v143 = vsel %vm142, %v139, %v141
  %v144 = vsel %vm142, %v137, %v139
  %v145 = vsel %vm142, %v135, %v137
  %v146 = vsel %vm142, %v141, %v135
  %v151 = vrot.slane %v145, 4
  %v152 = vrot.slane %v144, 4
  %v153 = vrot.slane %v143, 4
  %v154 = vrot.slane %v146, 4
  %159 = vst [vmem:[#allocation2 + $0x20] sm:$0x70] %v151
  %160 = vst [vmem:[#allocation2 + $0x28] sm:$0x70] %v152
  %161 = vst [vmem:[#allocation2 + $0x30] sm:$0x70] %v153
  %162 = vst [vmem:[#allocation2 + $0x38] sm:$0x70] %v154
  %163 = vrot.lane.b32.xlu0 %v16, 110
  %v164 = vpop.permute.xlu0 %163
  %165 = vrot.lane.b32.xlu0 %v17, 110
  %v166 = vpop.permute.xlu0 %165
  %167 = vrot.lane.b32.xlu0 %v22, 110
  %v168 = vpop.permute.xlu0 %167
  %169 = vrot.lane.b32.xlu0 %v23, 110
  %v170 = vpop.permute.xlu0 %169
  %vm171 = vcmp.lt.s32.totalorder %v50, 110
  %v172 = vsel %vm171, %v168, %v170
  %v173 = vsel %vm171, %v166, %v168
  %v174 = vsel %vm171, %v164, %v166
  %v175 = vsel %vm171, %v170, %v164
  %v180 = vrot.slane %v174, 1
  %v181 = vrot.slane %v173, 1
  %v182 = vrot.slane %v172, 1
  %v183 = vrot.slane %v175, 1
  %188 = vst [vmem:[#allocation2 + $0x20] sm:$0x80] %v180
  %189 = vst [vmem:[#allocation2 + $0x28] sm:$0x80] %v181
  %190 = vst [vmem:[#allocation2 + $0x30] sm:$0x80] %v182
  %191 = vst [vmem:[#allocation2 + $0x38] sm:$0x80] %v183
  %192 = vst [vmem:[#allocation2 + $0x40] sm:$0x3] %v180
  %193 = vst [vmem:[#allocation2 + $0x48] sm:$0x3] %v181
  %194 = vst [vmem:[#allocation2 + $0x50] sm:$0x3] %v182
  %195 = vst [vmem:[#allocation2 + $0x58] sm:$0x3] %v183
  %196 = vrot.lane.b32.xlu0 %v16, 96
  %v197 = vpop.permute.xlu0 %196
  %198 = vrot.lane.b32.xlu0 %v17, 96
  %v199 = vpop.permute.xlu0 %198
  %200 = vrot.lane.b32.xlu0 %v22, 96
  %v201 = vpop.permute.xlu0 %200
  %202 = vrot.lane.b32.xlu0 %v23, 96
  %v203 = vpop.permute.xlu0 %202
  %vm204 = vcmp.lt.s32.totalorder %v50, 96
  %v205 = vsel %vm204, %v201, %v203
  %v206 = vsel %vm204, %v199, %v201
  %v207 = vsel %vm204, %v197, %v199
  %v208 = vsel %vm204, %v203, %v197
  %v213 = vrot.slane %v207, 6
  %v214 = vrot.slane %v206, 6
  %v215 = vrot.slane %v205, 6
  %v216 = vrot.slane %v208, 6
  %221 = vst [vmem:[#allocation2 + $0x40] sm:$0x1c] %v213
  %222 = vst [vmem:[#allocation2 + $0x48] sm:$0x1c] %v214
  %223 = vst [vmem:[#allocation2 + $0x50] sm:$0x1c] %v215
  %224 = vst [vmem:[#allocation2 + $0x58] sm:$0x1c] %v216
  %225 = vrot.lane.b32.xlu0 %v16, 95
  %v226 = vpop.permute.xlu0 %225
  %227 = vrot.lane.b32.xlu0 %v17, 95
  %v228 = vpop.permute.xlu0 %227
  %229 = vrot.lane.b32.xlu0 %v22, 95
  %v230 = vpop.permute.xlu0 %229
  %231 = vrot.lane.b32.xlu0 %v23, 95
  %v232 = vpop.permute.xlu0 %231
  %vm233 = vcmp.lt.s32.totalorder %v50, 95
  %v234 = vsel %vm233, %v230, %v232
  %v235 = vsel %vm233, %v228, %v230
  %v236 = vsel %vm233, %v226, %v228
  %v237 = vsel %vm233, %v232, %v226
  %v242 = vrot.slane %v236, 3
  %v243 = vrot.slane %v235, 3
  %v244 = vrot.slane %v234, 3
  %v245 = vrot.slane %v237, 3
  %250 = vst [vmem:[#allocation2 + $0x40] sm:$0xe0] %v242
  %251 = vst [vmem:[#allocation2 + $0x48] sm:$0xe0] %v243
  %252 = vst [vmem:[#allocation2 + $0x50] sm:$0xe0] %v244
  %253 = vst [vmem:[#allocation2 + $0x58] sm:$0xe0] %v245
  %254 = vrot.lane.b32.xlu0 %v16, 94
  %v255 = vpop.permute.xlu0 %254
  %256 = vrot.lane.b32.xlu0 %v17, 94
  %v257 = vpop.permute.xlu0 %256
  %258 = vrot.lane.b32.xlu0 %v22, 94
  %v259 = vpop.permute.xlu0 %258
  %260 = vrot.lane.b32.xlu0 %v23, 94
  %v261 = vpop.permute.xlu0 %260
  %vm262 = vcmp.lt.s32.totalorder %v50, 94
  %v263 = vsel %vm262, %v259, %v261
  %v264 = vsel %vm262, %v257, %v259
  %v265 = vsel %vm262, %v255, %v257
  %v266 = vsel %vm262, %v261, %v255
  %267 = vst [vmem:[#allocation2 + $0x60] sm:$0x7] %v265
  %268 = vst [vmem:[#allocation2 + $0x68] sm:$0x7] %v264
  %269 = vst [vmem:[#allocation2 + $0x70] sm:$0x7] %v263
  %270 = vst [vmem:[#allocation2 + $0x78] sm:$0x7] %v266
  %v271 = vld [vmem:[%s1] sm:$0x3f]
  %v272 = vld [vmem:[#allocation2] sm:$0xff]
  %v273 = vld [vmem:[#allocation2 + $0x8] sm:$0xff]
  %v274 = vld [vmem:[#allocation2 + $0x10] sm:$0xff]
  %v275 = vld [vmem:[#allocation2 + $0x18] sm:$0xff]
  %v276 = vld [vmem:[#allocation2 + $0x20] sm:$0xff]
  %v277 = vld [vmem:[#allocation2 + $0x28] sm:$0xff]
  %v278 = vld [vmem:[#allocation2 + $0x30] sm:$0xff]
  %v279 = vld [vmem:[#allocation2 + $0x38] sm:$0xff]
  %v280 = vld [vmem:[#allocation2 + $0x40] sm:$0xff]
  %v281 = vld [vmem:[#allocation2 + $0x48] sm:$0xff]
  %v282 = vld [vmem:[#allocation2 + $0x50] sm:$0xff]
  %v283 = vld [vmem:[#allocation2 + $0x58] sm:$0xff]
  %v284 = vld [vmem:[#allocation2 + $0x60] sm:$0xff]
  %v285 = vld [vmem:[#allocation2 + $0x68] sm:$0xff]
  %v286 = vld [vmem:[#allocation2 + $0x70] sm:$0xff]
  %v287 = vld [vmem:[#allocation2 + $0x78] sm:$0xff]
  %vm288 = vcmask 261120
  %v290 = vsel %vm288, %v271, 0
  %292 = vmatpush.msra.mxu0 0.0
  %293 = vmatpush.msra.mxu0 0.0
  %294 = vmatpush.msra.mxu0 0.0
  %295 = vmatpush.msra.mxu0 0.0
  %296 = vmatpush.msra.mxu0 0.0
  %297 = vmatpush.msra.mxu0 0.0
  %298 = vmatpush.msra.mxu0 0.0
  %299 = vmatpush.msra.mxu0 0.0
  %300 = vmatpush.msra.mxu0 0.0
  %301 = vmatpush.msra.mxu0 0.0
  %302 = vmatpush.msra.mxu0 0.0
  %303 = vmatpush.msra.mxu0 0.0
  %304 = vmatpush.msra.mxu0 %v284
  %305 = vmatpush.msra.mxu0 %v280
  %306 = vmatpush.msra.mxu0 %v276
  %307 = vmatpush.msra.mxu0 %v272
  %308 = vmatmul.f32.gmra.mxu0 %v290
  %v309 = vpop.f32.mrf.mxu0
  %v310 = vadd.f32 0.0, %v309
  %311 = vdwg.mxu0
  %312 = vmatpush.msra.mxu0 0.0
  %313 = vmatpush.msra.mxu0 0.0
  %314 = vmatpush.msra.mxu0 0.0
  %315 = vmatpush.msra.mxu0 0.0
  %316 = vmatpush.msra.mxu0 0.0
  %317 = vmatpush.msra.mxu0 0.0
  %318 = vmatpush.msra.mxu0 0.0
  %319 = vmatpush.msra.mxu0 0.0
  %320 = vmatpush.msra.mxu0 0.0
  %321 = vmatpush.msra.mxu0 0.0
  %322 = vmatpush.msra.mxu0 0.0
  %323 = vmatpush.msra.mxu0 0.0
  %324 = vmatpush.msra.mxu0 %v285
  %325 = vmatpush.msra.mxu0 %v281
  %326 = vmatpush.msra.mxu0 %v277
  %327 = vmatpush.msra.mxu0 %v273
  %328 = vmatmul.f32.gmra.mxu0 %v290
  %v329 = vpop.f32.mrf.mxu0
  %v330 = vadd.f32 0.0, %v329
  %331 = vdwg.mxu0
  %332 = vmatpush.msra.mxu0 0.0
  %333 = vmatpush.msra.mxu0 0.0
  %334 = vmatpush.msra.mxu0 0.0
  %335 = vmatpush.msra.mxu0 0.0
  %336 = vmatpush.msra.mxu0 0.0
  %337 = vmatpush.msra.mxu0 0.0
  %338 = vmatpush.msra.mxu0 0.0
  %339 = vmatpush.msra.mxu0 0.0
  %340 = vmatpush.msra.mxu0 0.0
  %341 = vmatpush.msra.mxu0 0.0
  %342 = vmatpush.msra.mxu0 0.0
  %343 = vmatpush.msra.mxu0 0.0
  %344 = vmatpush.msra.mxu0 %v286
  %345 = vmatpush.msra.mxu0 %v282
  %346 = vmatpush.msra.mxu0 %v278
  %347 = vmatpush.msra.mxu0 %v274
  %348 = vmatmul.f32.gmra.mxu0 %v290
  %v349 = vpop.f32.mrf.mxu0
  %v350 = vadd.f32 0.0, %v349
  %351 = vdwg.mxu0
  %352 = vmatpush.msra.mxu0 0.0
  %353 = vmatpush.msra.mxu0 0.0
  %354 = vmatpush.msra.mxu0 0.0
  %355 = vmatpush.msra.mxu0 0.0
  %356 = vmatpush.msra.mxu0 0.0
  %357 = vmatpush.msra.mxu0 0.0
  %358 = vmatpush.msra.mxu0 0.0
  %359 = vmatpush.msra.mxu0 0.0
  %360 = vmatpush.msra.mxu0 0.0
  %361 = vmatpush.msra.mxu0 0.0
  %362 = vmatpush.msra.mxu0 0.0
  %363 = vmatpush.msra.mxu0 0.0
  %364 = vmatpush.msra.mxu0 %v287
  %365 = vmatpush.msra.mxu0 %v283
  %366 = vmatpush.msra.mxu0 %v279
  %367 = vmatpush.msra.mxu0 %v275
  %368 = vmatmul.f32.gmra.mxu0 %v290
  %v369 = vpop.f32.mrf.mxu0
  %v370 = vadd.f32 0.0, %v369
  %371 = vdwg.mxu0
  %372 = vst [vmem:[%s2] sm:$0x3f] %v310
  %373 = vst [vmem:[%s2 + $0x8] sm:$0x3f] %v330
  %s374 = scalar_lea.vmem %s2, 16
  %375 = vst [vmem:[%s374] sm:$0x3f] %v350
  %376 = vst [vmem:[%s374 + $0x8] sm:$0x3f] %v370
  // Predicated region
  $region10: #{conv2d_pallas.1} parent=0 // pred_check
    _
  $region11: #{conv2d_pallas.1} parent=0 // pred_check_branch
    %378 = sbr.rel (0) target = $region13
  $region12: #{conv2d_pallas.1} parent=0 // pred_region
    _
  $region13: #{conv2d_pallas.1} parent=0 // pred_fallthru
    _
  // Predicated region
  $region14: #{conv2d_pallas.1} parent=0 // pred_check
    _
  $region15: #{conv2d_pallas.1} parent=0 // pred_check_branch
    %380 = sbr.rel (0) target = $region17
  $region16: #{conv2d_pallas.1} parent=0 // pred_region
    _
  $region17: #{conv2d_pallas.1} parent=0 // pred_fallthru
    _

</llo_original>
